<compile_context>
chip_gen: v5e
topology: v5e:2x2
jax: 0.10.0
libtpu: 0.0.40
codegen_flags: <defaults>
</compile_context>

<pallas_src>
import functools

import jax
import jax.numpy as jnp
from jax import lax
from jax.experimental import pallas as pl
from jax.experimental.pallas import tpu as pltpu


def _round_up(x, m):
    return ((x + m - 1) // m) * m


def _cdiv(a, b):
    return (a + b - 1) // b


# ---------------------------------------------------------------------------
# Pallas kernel: fused  out = leaky_relu((W @ patchesT) * scale + bias)
# ---------------------------------------------------------------------------
def _conv_bn_lrelu_kernel(x_ref, w_ref, scale_ref, bias_ref, o_ref, *, slope):
    # x_ref:     (K, TS)   im2col^T patch tile (compute dtype, e.g. bf16)
    # w_ref:     (C2p, K)  reshaped conv weight (compute dtype)
    # scale_ref: (C2p, 1)  folded BN scale = gamma / sqrt(var + eps)   (f32)
    # bias_ref:  (C2p, 1)  folded BN bias  = beta - mean * scale       (f32)
    # o_ref:     (C2p, TS) output tile (f32); lane dim = spatial -> dense store
    acc = jnp.dot(w_ref[...], x_ref[...], preferred_element_type=jnp.float32)
    y = acc * scale_ref[...] + bias_ref[...]
    o_ref[...] = jnp.where(y > 0, y, slope * y).astype(o_ref.dtype)


def _im2col_T(x_nchw, kh, kw, stride, padding, dilation, compute_dtype):
    """Transposed im2col: (N, K, OH*OW) with K ordered (kh, kw, c1).

    Built directly from the NCHW input (no NCHW->NHWC transpose) so the GEMM
    output comes back in NCHW order with a plain reshape at the end.
    """
    N, C, H, W = x_nchw.shape
    x = jnp.pad(x_nchw, ((0, 0), (0, 0), (padding, padding),
                         (padding, padding))).astype(compute_dtype)
    OH = (H + 2 * padding - dilation * (kh - 1) - 1) // stride + 1
    OW = (W + 2 * padding - dilation * (kw - 1) - 1) // stride + 1
    cols = []
    for i in range(kh):
        for j in range(kw):
            h0, w0 = i * dilation, j * dilation
            cols.append(x[:, :, h0:h0 + stride * (OH - 1) + 1:stride,
                             w0:w0 + stride * (OW - 1) + 1:stride])  # (N,C,OH,OW)
    # (N, KH*KW, C, OH, OW) -> (N, K, S) ; K enumerates (kh, kw, c1)
    patches = jnp.stack(cols, axis=1).reshape(N, kh * kw * C, OH * OW)
    return patches, OH, OW


def conv_forward(x, weight, bn_gamma, bn_beta, bn_mean, bn_var,
                 *, stride=1, padding=0, dilation=1, eps=1e-5, slope=0.1,
                 tile_s=512, compute_dtype=jnp.bfloat16):
    """Conv2d(bias=False, groups=1) + BatchNorm2d(eval) + LeakyReLU(0.1).

    x:      (N, C1, H, W)    float32  (NCHW, PyTorch convention)
    weight: (C2, C1, KH, KW) float32  (PyTorch OIHW layout)
    Returns (N, C2, OH, OW)  float32.
    """
    N, C1, H, W = x.shape
    C2, _, KH, KW = weight.shape
    K = KH * KW * C1

    # --- glue (plain JAX): im2col^T + weight reshape + BN folding ---
    patches, OH, OW = _im2col_T(x, KH, KW, stride, padding, dilation,
                                compute_dtype)                      # (N, K, S)
    S = OH * OW

    w2d = jnp.transpose(weight, (0, 2, 3, 1)).reshape(C2, K)        # (C2, K)
    scale = bn_gamma / jnp.sqrt(bn_var + eps)                       # (C2,)
    bias = bn_beta - bn_mean * scale                                # (C2,)

    # Pad C2 only to a sublane multiple (x8): the lane (store) dim is the
    # 128-padded spatial axis, so stores are already dense without inflating
    # the HBM output by 128/C2.
    C2p = _round_up(C2, 8)
    if C2p != C2:
        w2d = jnp.pad(w2d, ((0, C2p - C2), (0, 0)))
        scale = jnp.pad(scale, (0, C2p - C2))
        bias = jnp.pad(bias, (0, C2p - C2))
    w2d = w2d.astype(compute_dtype)
    scale = scale.reshape(C2p, 1).astype(jnp.float32)
    bias = bias.reshape(C2p, 1).astype(jnp.float32)

    # Spatial (lane) tile: multiple of 128, as large as useful (<= 1024), but
    # keep >= 2 total grid steps when possible so both v7x TensorCores work.
    ts = max(128, min(int(tile_s), 1024)) // 128 * 128
    ts = min(ts, _round_up(S, 128))
    while ts > 128 and N * _cdiv(_round_up(S, ts), ts) < 2:
        ts -= 128
    S_pad = _round_up(S, ts)
    if S_pad != S:
        patches = jnp.pad(patches, ((0, 0), (0, 0), (0, S_pad - S)))

    grid = (N, S_pad // ts)

    # Explicit VMEM budget (per the v7x 64 MiB note). Per-step buffers here
    # are only tens of KiB; cap at 32 MiB which fits every generation.
    in_bytes = jnp.dtype(compute_dtype).itemsize
    est_vmem = (2 * K * ts * in_bytes          # double-buffered patch tiles
                + 2 * C2p * K * in_bytes       # resident weight (2 bufs)
                + 2 * C2p * ts * 4             # double-buffered f32 out tiles
                + 4 * C2p * 4)                 # scale / bias
    vmem_limit = int(min(32 * 1024 * 1024, max(16 * 1024 * 1024, 4 * est_vmem)))

    out3 = pl.pallas_call(
        functools.partial(_conv_bn_lrelu_kernel, slope=slope),
        out_shape=jax.ShapeDtypeStruct((N, C2p, S_pad), jnp.float32),
        grid_spec=pltpu.PrefetchScalarGridSpec(
            num_scalar_prefetch=0,
            grid=grid,
            in_specs=[
                pl.BlockSpec((None, K, ts), lambda n, s: (n, 0, s)),
                pl.BlockSpec((C2p, K), lambda n, s: (0, 0)),
                pl.BlockSpec((C2p, 1), lambda n, s: (0, 0)),
                pl.BlockSpec((C2p, 1), lambda n, s: (0, 0)),
            ],
            out_specs=pl.BlockSpec((None, C2p, ts), lambda n, s: (n, 0, s)),
        ),
        compiler_params=pltpu.CompilerParams(
            dimension_semantics=("parallel", "parallel"),
            vmem_limit_bytes=vmem_limit),
    )(patches, w2d, scale, bias)

    # NCHW output via a plain reshape -- no NHWC->NCHW transpose round-trip.
    return out3[:, :C2, :S].reshape(N, C2, OH, OW)


# ---------------------------------------------------------------------------
# Pure-JAX reference (for sanity check)
# ---------------------------------------------------------------------------
def conv_forward_ref(x, weight, bn_gamma, bn_beta, bn_mean, bn_var,
                     *, stride=1, padding=0, dilation=1, eps=1e-5, slope=0.1):
    y = lax.conv_general_dilated(
        x, weight,
        window_strides=(stride, stride),
        padding=((padding, padding), (padding, padding)),
        rhs_dilation=(dilation, dilation),
        dimension_numbers=("NCHW", "OIHW", "NCHW"),
    )
    scale = (bn_gamma / jnp.sqrt(bn_var + eps)).reshape(1, -1, 1, 1)
    bias = (bn_beta - bn_mean * bn_gamma / jnp.sqrt(bn_var + eps)).reshape(1, -1, 1, 1)
    y = y * scale + bias
    return jnp.where(y > 0, y, slope * y)


if __name__ == "__main__":
    # Conv(c1=4, c2=8, kernel_size=3, stride=1, padding=1) with the module
    # defaults act='leaky_relu', depthwise=False.
    N, C1, H, W = 2, 4, 16, 16
    C2, KH, KW = 8, 3, 3
    stride, padding, dilation = 1, 1, 1

    key = jax.random.PRNGKey(0)
    kx, kw_, kg, kb, km, kv = jax.random.split(key, 6)

    x = jax.random.normal(kx, (N, C1, H, W), dtype=jnp.float32)
    weight = jax.random.normal(kw_, (C2, C1, KH, KW), dtype=jnp.float32) * 0.1
    bn_gamma = jax.random.uniform(kg, (C2,), dtype=jnp.float32, minval=0.5, maxval=1.5)
    bn_beta = jax.random.normal(kb, (C2,), dtype=jnp.float32) * 0.1
    bn_mean = jax.random.normal(km, (C2,), dtype=jnp.float32) * 0.1
    bn_var = jax.random.uniform(kv, (C2,), dtype=jnp.float32, minval=0.5, maxval=1.5)

    kwargs = dict(stride=stride, padding=padding, dilation=dilation)

    # 1) exact-precision path: f32 compute vs f32 reference (tight tolerance).
    out_f32 = jax.block_until_ready(
        conv_forward(x, weight, bn_gamma, bn_beta, bn_mean, bn_var,
                     compute_dtype=jnp.float32, **kwargs))
    ref = conv_forward_ref(x, weight, bn_gamma, bn_beta, bn_mean, bn_var, **kwargs)
    assert out_f32.shape == (N, C2, H, W), out_f32.shape
    assert jnp.allclose(out_f32, ref, atol=1e-4, rtol=1e-4), \
        float(jnp.max(jnp.abs(out_f32 - ref)))

    # 2) default fast path: bf16 operands (MXU-native), f32 accumulation.
    #    Compare against a reference fed the same bf16-rounded operands so
    #    only reduction order differs.
    out_bf16 = jax.block_until_ready(
        conv_forward(x, weight, bn_gamma, bn_beta, bn_mean, bn_var, **kwargs))
    xb = x.astype(jnp.bfloat16).astype(jnp.float32)
    wb = weight.astype(jnp.bfloat16).astype(jnp.float32)
    ref_b = conv_forward_ref(xb, wb, bn_gamma, bn_beta, bn_mean, bn_var, **kwargs)
    assert out_bf16.shape == (N, C2, H, W), out_bf16.shape
    assert jnp.allclose(out_bf16, ref_b, atol=2e-3, rtol=2e-3), \
        float(jnp.max(jnp.abs(out_bf16 - ref_b)))

    print("KERNEL_OK")
</pallas_src>

<mosaic_0001>
module attributes {stable_mosaic.version = 11 : i64} {
  func.func @_conv_bn_lrelu_kernel(%arg0: i32, %arg1: i32, %arg2: memref<1x36x256xf32, #tpu.memory_space<vmem>>, %arg3: memref<8x36xf32, #tpu.memory_space<vmem>>, %arg4: memref<8x1xf32, #tpu.memory_space<vmem>>, %arg5: memref<8x1xf32, #tpu.memory_space<vmem>>, %arg6: memref<1x8x256xf32, #tpu.memory_space<vmem>>) attributes {dimension_semantics = [#tpu.dimension_semantics<parallel>, #tpu.dimension_semantics<parallel>], iteration_bounds = array<i64: 2, 1>, scalar_prefetch = 0 : i64, scratch_operands = 0 : i64, tpu.core_type = #tpu.core_type<tc>, window_params = [{transform_indices = @transform_0, window_bounds = array<i64: 1, 36, 256>}, {pipeline_mode = #tpu.pipeline_mode<synchronous>, transform_indices = @transform_1, window_bounds = array<i64: 8, 36>}, {pipeline_mode = #tpu.pipeline_mode<synchronous>, transform_indices = @transform_2, window_bounds = array<i64: 8, 1>}, {pipeline_mode = #tpu.pipeline_mode<synchronous>, transform_indices = @transform_3, window_bounds = array<i64: 8, 1>}, {transform_indices = @transform_4, window_bounds = array<i64: 1, 8, 256>}]} {
    %c0 = arith.constant 0 : index
    %c0_0 = arith.constant 0 : index
    %0 = vector.load %arg3[%c0, %c0_0] : memref<8x36xf32, #tpu.memory_space<vmem>>, vector<8x36xf32>
    %c0_1 = arith.constant 0 : index
    %c0_2 = arith.constant 0 : index
    %c0_3 = arith.constant 0 : index
    %1 = vector.load %arg2[%c0_1, %c0_2, %c0_3] : memref<1x36x256xf32, #tpu.memory_space<vmem>>, vector<1x36x256xf32>
    %2 = vector.shape_cast %1 : vector<1x36x256xf32> to vector<36x256xf32>
    %cst = arith.constant dense<0.000000e+00> : vector<8x256xf32>
    %3 = tpu.matmul %0, %2, %cst {dimension_numbers = #tpu.dot_dimension_numbers<[1], [0], [0], [1], [0, 0, 1, 1], [], []>} : vector<8x36xf32>, vector<36x256xf32>, vector<8x256xf32> -> vector<8x256xf32>
    %c0_4 = arith.constant 0 : index
    %c0_5 = arith.constant 0 : index
    %4 = vector.load %arg4[%c0_4, %c0_5] : memref<8x1xf32, #tpu.memory_space<vmem>>, vector<8x1xf32>
    %5 = vector.broadcast %4 : vector<8x1xf32> to vector<8x256xf32>
    %6 = arith.mulf %3, %5 : vector<8x256xf32>
    %c0_6 = arith.constant 0 : index
    %c0_7 = arith.constant 0 : index
    %7 = vector.load %arg5[%c0_6, %c0_7] : memref<8x1xf32, #tpu.memory_space<vmem>>, vector<8x1xf32>
    %8 = vector.broadcast %7 : vector<8x1xf32> to vector<8x256xf32>
    %9 = arith.addf %6, %8 : vector<8x256xf32>
    %cst_8 = arith.constant 0.000000e+00 : f32
    %10 = vector.broadcast %cst_8 : f32 to vector<8x256xf32>
    %11 = arith.cmpf ogt, %9, %10 : vector<8x256xf32>
    %cst_9 = arith.constant 1.000000e-01 : f32
    %12 = vector.broadcast %cst_9 : f32 to vector<8x256xf32>
    %13 = arith.mulf %12, %9 : vector<8x256xf32>
    %14 = arith.select %11, %9, %13 : vector<8x256xi1>, vector<8x256xf32>
    %c0_10 = arith.constant 0 : index
    %c0_11 = arith.constant 0 : index
    %c0_12 = arith.constant 0 : index
    %15 = vector.load %arg6[%c0_10, %c0_11, %c0_12] : memref<1x8x256xf32, #tpu.memory_space<vmem>>, vector<1x8x256xf32>
    %16 = vector.shape_cast %15 : vector<1x8x256xf32> to vector<8x256xf32>
    %17 = vector.shape_cast %14 : vector<8x256xf32> to vector<1x8x256xf32>
    tpu.vector_store %arg6[%c0_10, %c0_11, %c0_12], %17 {strides = array<i32>} : memref<1x8x256xf32, #tpu.memory_space<vmem>>, vector<1x8x256xf32>,
    return
  }
  func.func @transform_0(%arg0: i32, %arg1: i32) -> (i32, i32, i32) {
    %c0_i32 = arith.constant 0 : i32
    %c0_i32_0 = arith.constant 0 : i32
    return %arg0, %c0_i32, %arg1 : i32, i32, i32
  }
  func.func @transform_1(%arg0: i32, %arg1: i32) -> (i32, i32) {
    %c0_i32 = arith.constant 0 : i32
    %c0_i32_0 = arith.constant 0 : i32
    %c0_i32_1 = arith.constant 0 : i32
    return %c0_i32, %c0_i32_0 : i32, i32
  }
  func.func @transform_2(%arg0: i32, %arg1: i32) -> (i32, i32) {
    %c0_i32 = arith.constant 0 : i32
    %c0_i32_0 = arith.constant 0 : i32
    %c0_i32_1 = arith.constant 0 : i32
    return %c0_i32, %c0_i32_0 : i32, i32
  }
  func.func @transform_3(%arg0: i32, %arg1: i32) -> (i32, i32) {
    %c0_i32 = arith.constant 0 : i32
    %c0_i32_0 = arith.constant 0 : i32
    %c0_i32_1 = arith.constant 0 : i32
    return %c0_i32, %c0_i32_0 : i32, i32
  }
  func.func @transform_4(%arg0: i32, %arg1: i32) -> (i32, i32, i32) {
    %c0_i32 = arith.constant 0 : i32
    %c0_i32_0 = arith.constant 0 : i32
    return %arg0, %c0_i32, %arg1 : i32, i32, i32
  }
}

</mosaic_0001>

<llo_original>
// kernel: tpu_custom_call.1
$region0: #{tpu_custom_call.1}
  #allocation0 [shape = 'u32[]', space=smem, size = 0x4, offset = 0x4, fixed_abs, tag = 'smem constant byte address 0x4 - core index']
  #allocation1 [shape = 'u32[72,128]{1,0:T(1,128)}', space=vmem, size = 0x9000, scoped, tag = 'internal scratch']
  %s0 = inlined_call_operand.vmem [shape: f32[2,36,256], index: 0, kind: input, shape index: {}]
  %s1 = inlined_call_operand.vmem [shape: f32[8,36], index: 1, kind: input, shape index: {}]
  %s2 = inlined_call_operand.vmem [shape: f32[8,1], index: 2, kind: input, shape index: {}]
  %s3 = inlined_call_operand.vmem [shape: f32[8,1], index: 3, kind: input, shape index: {}]
  %s4 = inlined_call_operand.hbm [shape: f32[2,8,256], index: 4, kind: output, shape index: {}]
  %s5 = sld [smem:[#allocation0]]
  $region49: #{tpu_custom_call.1} parent=0
    _
  %s7 = ssub.s32 1, %s5
  %s8 = scalar_select 0, %s7, %s5
  $region1: #{tpu_custom_call.1} parent=0
    #allocation2 [shape = 'u8[16384]{0}', space=vmem, size = 0x4000, scoped, tag = 'output window, operand 0']
    #allocation3 [shape = 's32[2]{0}', space=sflag, size = 0x8, scoped, tag = 'scoped memory for tpu_custom_call.1']
    %9 = vsyncpa [#allocation3], 0
    %s10 = scalar_lea.sflag [#allocation3], 1
    %11 = vsyncpa %s10, 0
    loop: start=0, step=1, limit=4
    $region2: #{tpu_custom_call.1} parent=1 // loop_pre_header
      _
    $region3: #{tpu_custom_call.1} parent=1 // loop_header
      %s13 = sphi 0, %s17
      %p14 = scmp.ge.s32.totalorder %s13, 4
      %s20 = sphi 0, %s32
      %s21 = sphi 0, %s28
      %s22 = sphi 0, %s20
      %s23 = sphi 0, %s21
      %s24 = sphi 0, %s22
      %s25 = sphi 0, %s23
      %s37 = sphi 0, %s39
      %s40 = sphi 0, %s37
      %s41 = sphi 0, %s40
      %s57 = sphi 0, %s41
      %s61 = sphi 0, %s61
      %s63 = sphi 0, %s61
      %s64 = sphi 0, %s63
      %s78 = sphi 0, %s64
      %s82 = sphi 0, %s82
      %s84 = sphi 0, %s82
      %s85 = sphi 0, %s84
      %s99 = sphi 0, %s85
      %s103 = sphi 0, %s103
      %s105 = sphi 0, %s103
      %s106 = sphi 0, %s105
      %s120 = sphi 0, %s106
      %s128 = sphi 0, %s130
      %s131 = sphi 0, %s128
      %s132 = sphi 0, %s131
      %s148 = sphi 0, %s132
    $region4: #{tpu_custom_call.1} parent=1 // loop_header_branch
      %16 = sbr.rel (%p14) target = $region8
    $region5: #{tpu_custom_call.1} parent=1 // loop_body
      %s18 = ssub.s32 %s13, 1
      %s19 = ssub.s32 %s13, 2
      %s26 = sadd.s32 1, %s21
      %p27 = scmp.ge.s32.totalorder %s26, 1
      %s28 = scalar_select %p27, 0, %s26
      %s29 = sadd.s32 1, %s20
      %s30 = scalar_select %p27, %s29, %s20
      %p31 = scmp.ge.s32.totalorder %s30, 2
      %s32 = scalar_select %p31, 0, %s30
      %s33 = ssub.s32 %s20, %s32
      %s34 = ssub.s32 %s21, %s28
      %s35 = sor.u32 %s33, %s34
      %p36 = scmp.eq.s32.totalorder %s35, 0
      %s38 = sadd.s32 %s37, 1
      %s39 = scalar_select %p36, %s37, %s38
      %p42 = pneg %p36
      %p43 = scmp.eq.s32.totalorder %s13, 1
      %p44 = por %p42, %p43
      %p45 = scmp.ne.s32.totalorder %s37, %s40
      %p46 = scmp.eq.s32.totalorder %s13, 0
      %p47 = por %p45, %p46
      %p48 = scmp.ne.s32.totalorder %s37, %s40
      %p49 = scmp.eq.s32.totalorder %s18, 1
      %p50 = por %p48, %p49
      %p51 = scmp.ne.s32.totalorder %s40, %s41
      %p52 = scmp.eq.s32.totalorder %s18, 0
      %p53 = por %p51, %p52
      %p54 = scmp.ne.s32.totalorder %s40, %s41
      %p55 = scmp.eq.s32.totalorder %s19, 1
      %p56 = por %p54, %p55
      %p58 = scmp.ne.s32.totalorder %s41, %s57
      %p59 = scmp.eq.s32.totalorder %s19, 0
      %p60 = por %p58, %p59
      %s62 = sadd.s32 %s61, 1
      %p65 = scmp.eq.s32.totalorder %s13, 1
      %p66 = scmp.ne.s32.totalorder %s61, %s63
      %p67 = scmp.eq.s32.totalorder %s13, 0
      %p68 = por %p66, %p67
      %p69 = scmp.ne.s32.totalorder %s61, %s63
      %p70 = scmp.eq.s32.totalorder %s18, 1
      %p71 = por %p69, %p70
      %p72 = scmp.ne.s32.totalorder %s63, %s64
      %p73 = scmp.eq.s32.totalorder %s18, 0
      %p74 = por %p72, %p73
      %p75 = scmp.ne.s32.totalorder %s63, %s64
      %p76 = scmp.eq.s32.totalorder %s19, 1
      %p77 = por %p75, %p76
      %p79 = scmp.ne.s32.totalorder %s64, %s78
      %p80 = scmp.eq.s32.totalorder %s19, 0
      %p81 = por %p79, %p80
      %s83 = sadd.s32 %s82, 1
      %p86 = scmp.eq.s32.totalorder %s13, 1
      %p87 = scmp.ne.s32.totalorder %s82, %s84
      %p88 = scmp.eq.s32.totalorder %s13, 0
      %p89 = por %p87, %p88
      %p90 = scmp.ne.s32.totalorder %s82, %s84
      %p91 = scmp.eq.s32.totalorder %s18, 1
      %p92 = por %p90, %p91
      %p93 = scmp.ne.s32.totalorder %s84, %s85
      %p94 = scmp.eq.s32.totalorder %s18, 0
      %p95 = por %p93, %p94
      %p96 = scmp.ne.s32.totalorder %s84, %s85
      %p97 = scmp.eq.s32.totalorder %s19, 1
      %p98 = por %p96, %p97
      %p100 = scmp.ne.s32.totalorder %s85, %s99
      %p101 = scmp.eq.s32.totalorder %s19, 0
      %p102 = por %p100, %p101
      %s104 = sadd.s32 %s103, 1
      %p107 = scmp.eq.s32.totalorder %s13, 1
      %p108 = scmp.ne.s32.totalorder %s103, %s105
      %p109 = scmp.eq.s32.totalorder %s13, 0
      %p110 = por %p108, %p109
      %p111 = scmp.ne.s32.totalorder %s103, %s105
      %p112 = scmp.eq.s32.totalorder %s18, 1
      %p113 = por %p111, %p112
      %p114 = scmp.ne.s32.totalorder %s105, %s106
      %p115 = scmp.eq.s32.totalorder %s18, 0
      %p116 = por %p114, %p115
      %p117 = scmp.ne.s32.totalorder %s105, %s106
      %p118 = scmp.eq.s32.totalorder %s19, 1
      %p119 = por %p117, %p118
      %p121 = scmp.ne.s32.totalorder %s106, %s120
      %p122 = scmp.eq.s32.totalorder %s19, 0
      %p123 = por %p121, %p122
      %s124 = ssub.s32 %s20, %s32
      %s125 = ssub.s32 %s21, %s28
      %s126 = sor.u32 %s124, %s125
      %p127 = scmp.eq.s32.totalorder %s126, 0
      %s129 = sadd.s32 %s128, 1
      %s130 = scalar_select %p127, %s128, %s129
      %p133 = pneg %p127
      %p134 = scmp.eq.s32.totalorder %s13, 1
      %p135 = por %p133, %p134
      %p136 = scmp.ne.s32.totalorder %s128, %s131
      %p137 = scmp.eq.s32.totalorder %s13, 0
      %p138 = por %p136, %p137
      %p139 = scmp.ne.s32.totalorder %s128, %s131
      %p140 = scmp.eq.s32.totalorder %s18, 1
      %p141 = por %p139, %p140
      %p142 = scmp.ne.s32.totalorder %s131, %s132
      %p143 = scmp.eq.s32.totalorder %s18, 0
      %p144 = por %p142, %p143
      %p145 = scmp.ne.s32.totalorder %s131, %s132
      %p146 = scmp.eq.s32.totalorder %s19, 1
      %p147 = por %p145, %p146
      %p149 = scmp.ne.s32.totalorder %s132, %s148
      %p150 = scmp.eq.s32.totalorder %s19, 0
      %p151 = por %p149, %p150
      %p152 = scmp.le.s32.totalorder 1, %s13
      %p153 = scmp.lt.s32.totalorder %s13, 3
      %p154 = pnand %p152, %p153
      %p155 = pneg %p154
      // Predicated region
      $region9: #{tpu_custom_call.1} parent=5 // pred_check
        _
      $region10: #{tpu_custom_call.1} parent=5 // pred_check_branch
        %157 = sbr.rel (%p154) target = $region12
      $region11: #{tpu_custom_call.1} parent=5 // pred_region
        %s158 = ssub.s32 %s13, 1
        // Predicated region
        $region13: #{tpu_custom_call.1} parent=11 // pred_check
          %p159 = pneg %p74
        $region14: #{tpu_custom_call.1} parent=11 // pred_check_branch
          %161 = sbr.rel (%p159) target = $region16
        $region15: #{tpu_custom_call.1} parent=11 // pred_region
          _
        $region16: #{tpu_custom_call.1} parent=11 // pred_fallthru
          _
        // Predicated region
        $region17: #{tpu_custom_call.1} parent=11 // pred_check
          %p162 = pneg %p95
        $region18: #{tpu_custom_call.1} parent=11 // pred_check_branch
          %164 = sbr.rel (%p162) target = $region20
        $region19: #{tpu_custom_call.1} parent=11 // pred_region
          _
        $region20: #{tpu_custom_call.1} parent=11 // pred_fallthru
          _
        // Predicated region
        $region21: #{tpu_custom_call.1} parent=11 // pred_check
          %p165 = pneg %p116
        $region22: #{tpu_custom_call.1} parent=11 // pred_check_branch
          %167 = sbr.rel (%p165) target = $region24
        $region23: #{tpu_custom_call.1} parent=11 // pred_region
          _
        $region24: #{tpu_custom_call.1} parent=11 // pred_fallthru
          _
      $region12: #{tpu_custom_call.1} parent=5 // pred_fallthru
        _
      %p168 = scmp.lt.s32.totalorder %s13, 2
      // Predicated region
      $region25: #{tpu_custom_call.1} parent=5 // pred_check
        %p169 = pneg %p168
      $region26: #{tpu_custom_call.1} parent=5 // pred_check_branch
        %171 = sbr.rel (%p169) target = $region28
      $region27: #{tpu_custom_call.1} parent=5 // pred_region
        // Predicated region
        $region29: #{tpu_custom_call.1} parent=27 // pred_check
          %p172 = pneg %p47
        $region30: #{tpu_custom_call.1} parent=27 // pred_check_branch
          %174 = sbr.rel (%p172) target = $region32
        $region31: #{tpu_custom_call.1} parent=27 // pred_region
          %s175 = smul.u32 2, %s21
          %p176 = scmp.lt.s32.totalorder %s20, 1
          %s177 = scalar_select %p176, %s20, 1
          %p178 = scmp.lt.s32.totalorder %s175, 1
          %s179 = scalar_select %p178, %s175, 1
          %s180 = smul.addr %s177, 10
          %s181 = sadd.s32 %s179, %s180
          %s182 = smul.addr %s181, 8
          %s183 = scalar_lea.vmem %s0, %s182
          %s184 = smul.u32 2, %s21
        $region32: #{tpu_custom_call.1} parent=27 // pred_fallthru
          _
      $region28: #{tpu_custom_call.1} parent=5 // pred_fallthru
        _
      %p185 = scmp.le.s32.totalorder 1, %s13
      %p186 = scmp.lt.s32.totalorder %s13, 3
      %p187 = pnand %p185, %p186
      %p188 = pneg %p187
      // Predicated region
      $region33: #{tpu_custom_call.1} parent=5 // pred_check
        _
      $region34: #{tpu_custom_call.1} parent=5 // pred_check_branch
        %190 = sbr.rel (%p187) target = $region36
      $region35: #{tpu_custom_call.1} parent=5 // pred_region
        %s191 = ssub.s32 %s13, 1
        %s192 = smul.u32 2, %s23
        %p193 = scmp.lt.s32.totalorder %s22, 1
        %s194 = scalar_select %p193, %s22, 1
        %p195 = scmp.lt.s32.totalorder %s192, 1
        %s196 = scalar_select %p195, %s192, 1
        %s197 = smul.addr %s194, 10
        %s198 = sadd.s32 %s196, %s197
        %s199 = smul.addr %s198, 8
        %s200 = scalar_lea.vmem %s0, %s199
        %p201 = pneg %p53
        %p202 = pneg %p50
        %p203 = pneg %p74
        %p204 = pneg %p71
        %p205 = pneg %p95
        %p206 = pneg %p92
        %p207 = pneg %p116
        %p208 = pneg %p113
        %p209 = pneg %p144
        %p210 = pneg %p141
        %s211 = sand.u32 %s131, 1
        %s212 = scalar_lea.sflag [#allocation3], %s211
        %s213 = sand.u32 %s131, 1
        %s214 = smul.addr %s213, 16
        %s215 = scalar_lea.vmem [#allocation2], %s214
        %s216 = smul.u32 2, %s23
        %p217 = scmp.lt.s32.totalorder %s22, 1
        %s218 = scalar_select %p217, %s22, 1
        %p219 = scmp.lt.s32.totalorder %s216, 1
        %s220 = scalar_select %p219, %s216, 1
        %s221 = smul.addr %s218, 10
        %s222 = sadd.s32 %s220, %s221
        %s223 = smul.addr %s222, 8
        %s224 = scalar_lea.vmem %s0, %s223
        %s225 = smul.u32 2, %s23
        %s226 = smul.u32 2, %s23
        %v227 = vld [vmem:[%s1] sm:$0xff]
        %v228 = vld [vmem:[%s224] sm:$0xff]
        %v229 = vld [vmem:[%s224 + $0x8] sm:$0xff]
        %v230 = vld [vmem:[%s224 + $0x10] sm:$0xff]
        %v231 = vld [vmem:[%s224 + $0x18] sm:$0xff]
        %v232 = vld [vmem:[%s224 + $0x20] sm:$0xff]
        %v233 = vld [vmem:[%s224 + $0x28] sm:$0xff]
        %v234 = vld [vmem:[%s224 + $0x30] sm:$0xff]
        %v235 = vld [vmem:[%s224 + $0x38] sm:$0xff]
        %v236 = vld [vmem:[%s224 + $0x40] sm:$0xf]
        %v237 = vld [vmem:[%s224 + $0x48] sm:$0xf]
        %vm238 = vcmask 293888
        %v240 = vsel %vm238, %v227, 0
        %vm242 = vcmask 1043456
        %v244 = vsel %vm242, %v236, 0
        %v247 = vsel %vm242, %v237, 0
        %249 = vmatpush.msra.mxu0 0.0
        %250 = vmatpush.msra.mxu0 0.0
        %251 = vmatpush.msra.mxu0 0.0
        %252 = vmatpush.msra.mxu0 0.0
        %253 = vmatpush.msra.mxu0 0.0
        %254 = vmatpush.msra.mxu0 0.0
        %255 = vmatpush.msra.mxu0 0.0
        %256 = vmatpush.msra.mxu0 0.0
        %257 = vmatpush.msra.mxu0 0.0
        %258 = vmatpush.msra.mxu0 0.0
        %259 = vmatpush.msra.mxu0 0.0
        %260 = vmatpush.msra.mxu0 %v244
        %261 = vmatpush.msra.mxu0 %v234
        %262 = vmatpush.msra.mxu0 %v232
        %263 = vmatpush.msra.mxu0 %v230
        %264 = vmatpush.msra.mxu0 %v228
        %265 = vmatmul.f32.gmra.mxu0 %v240
        %v266 = vpop.f32.mrf.mxu0
        %v267 = vadd.f32 0.0, %v266
        %268 = vdwg.mxu0
        %269 = vmatpush.msra.mxu0 0.0
        %270 = vmatpush.msra.mxu0 0.0
        %271 = vmatpush.msra.mxu0 0.0
        %272 = vmatpush.msra.mxu0 0.0
        %273 = vmatpush.msra.mxu0 0.0
        %274 = vmatpush.msra.mxu0 0.0
        %275 = vmatpush.msra.mxu0 0.0
        %276 = vmatpush.msra.mxu0 0.0
        %277 = vmatpush.msra.mxu0 0.0
        %278 = vmatpush.msra.mxu0 0.0
        %279 = vmatpush.msra.mxu0 0.0
        %280 = vmatpush.msra.mxu0 %v247
        %281 = vmatpush.msra.mxu0 %v235
        %282 = vmatpush.msra.mxu0 %v233
        %283 = vmatpush.msra.mxu0 %v231
        %284 = vmatpush.msra.mxu0 %v229
        %285 = vmatmul.f32.gmra.mxu0 %v240
        %v286 = vpop.f32.mrf.mxu0
        %v287 = vadd.f32 0.0, %v286
        %288 = vdwg.mxu0
        %v289 = vld [vmem:[%s2] sm:$0xff]
        %291 = vset.pattern.permute.xlu0 0
        %292 = vperm.xlu0 %291, %v289
        %v293 = vpop.permute.xlu0 %292
        %v295 = vmul.f32 %v267, %v293
        %v296 = vmul.f32 %v287, %v293
        %v297 = vld [vmem:[%s3] sm:$0xff]
        %299 = vset.pattern.permute.xlu0 0
        %300 = vperm.xlu0 %299, %v297
        %v301 = vpop.permute.xlu0 %300
        %v303 = vadd.f32 %v295, %v301
        %v304 = vadd.f32 %v296, %v301
        %vm305 = vcmp.gt.f32.partialorder %v303, 0.0
        %vm306 = vcmp.gt.f32.partialorder %v304, 0.0
        %v307 = vmul.f32 %v303, 0.1
        %v308 = vmul.f32 %v304, 0.1
        %v309 = vsel %vm305, %v303, %v307
        %v310 = vsel %vm306, %v304, %v308
        %311 = vst [vmem:[%s215] sm:$0xff] %v309
        %312 = vst [vmem:[%s215 + $0x8] sm:$0xff] %v310
        %s313 = sand.u32 %s131, 1
        %s314 = scalar_lea.sflag [#allocation3], %s313
        %s315 = sand.u32 %s131, 1
        %s316 = smul.addr %s315, 16
        %s317 = scalar_lea.vmem [#allocation2], %s316
        // Predicated region
        $region37: #{tpu_custom_call.1} parent=35 // pred_check
          %p318 = pneg %p141
        $region38: #{tpu_custom_call.1} parent=35 // pred_check_branch
          %320 = sbr.rel (%p318) target = $region40
        $region39: #{tpu_custom_call.1} parent=35 // pred_region
          %s321 = smul.u32 2, %s23
          %323 = vsyncadd %s314, 0
          %s324 = smul.addr %s22, 2
          %s325 = sadd.s32 %s321, %s324
          %s326 = smul.addr %s325, 8
          %s327 = scalar_lea.hbm %s4, %s326
          %s329 = sshll.u32 %s317, 4
          %s330 = int_to_ptr.vmem [resolvable:$true] %s329
          %s331 = sshll.u32 %s327, 4
          %s332 = int_to_ptr.hbm [resolvable:$true] %s331
          %334 = dma.vmem_to_hbm [thread:$0]  %s330, 256, %s332, %s314
        $region40: #{tpu_custom_call.1} parent=35 // pred_fallthru
          _
      $region36: #{tpu_custom_call.1} parent=5 // pred_fallthru
        _
      %p335 = scmp.le.s32.totalorder 2, %s13
      // Predicated region
      $region41: #{tpu_custom_call.1} parent=5 // pred_check
        %p336 = pneg %p335
      $region42: #{tpu_custom_call.1} parent=5 // pred_check_branch
        %338 = sbr.rel (%p336) target = $region44
      $region43: #{tpu_custom_call.1} parent=5 // pred_region
        %s339 = ssub.s32 %s13, 2
        // Predicated region
        $region45: #{tpu_custom_call.1} parent=43 // pred_check
          %p340 = pneg %p147
        $region46: #{tpu_custom_call.1} parent=43 // pred_check_branch
          %342 = sbr.rel (%p340) target = $region48
        $region47: #{tpu_custom_call.1} parent=43 // pred_region
          %s343 = sand.u32 %s132, 1
          %s344 = scalar_lea.sflag [#allocation3], %s343
          %s345 = sand.u32 %s132, 1
          %s346 = smul.addr %s345, 16
          %s347 = scalar_lea.vmem [#allocation2], %s346
          %349 = dma.done %s344, 256
        $region48: #{tpu_custom_call.1} parent=43 // pred_fallthru
          _
      $region44: #{tpu_custom_call.1} parent=5 // pred_fallthru
        _
    $region6: #{tpu_custom_call.1} parent=1 // loop_footer
      %s17 = sadd.s32 1, %s13
    $region7: #{tpu_custom_call.1} parent=1 // loop_footer_branch
      %12 = sbr.rel target = $region3
    $region8: #{tpu_custom_call.1} parent=1 // loop_exit
      _
    %350 = vsyncpa [#allocation3], 1
    %s351 = scalar_lea.sflag [#allocation3], 1
    %352 = vsyncpa %s351, 1

</llo_original>
